<compile_context>
chip_gen: v7x
topology: tpu7x:2x2x1
jax: 0.10.0
libtpu: 0.0.40
codegen_flags: <defaults>
</compile_context>

<pallas_src>
import functools

import jax
import jax.numpy as jnp
from jax.experimental import pallas as pl
from jax.experimental.pallas import tpu as pltpu

DEFAULT_HIDDEN_LAYERS = [64, 32]
DEFAULT_DROPOUT_RATE = 0.1        # identity at inference
LN_EPS = 1e-5                     # PyTorch nn.LayerNorm default
H_PAD = 128                       # lane-padded feature width
MAX_BATCH_TILE = 2048             # rows per grid step (few MiB of VMEM)
PARAM_DTYPE = jnp.bfloat16        # MXU-native operands for the 128x128 matmuls
OUT_DTYPE = jnp.bfloat16          # halves output-writeback HBM bytes
VMEM_LIMIT_BYTES = 32 * 1024 * 1024


def _round_up(x, m):
    return (x + m - 1) // m * m


def _ln_no_affine(h, n_logical):
    """LayerNorm without gamma/beta (those are folded into the next layer).

    h is exactly 0 in the padded lanes, so one fused sum / sum-of-squares over
    all 128 lanes equals the sums over the logical features.
    NOTE: one-pass E[x^2]-E[x]^2 variance in f32 — fine for unit-scale
    post-ReLU activations (guarded by eps).
    """
    s = jnp.sum(h, axis=-1, keepdims=True)
    ss = jnp.sum(h * h, axis=-1, keepdims=True)
    inv_n = 1.0 / n_logical
    mu = s * inv_n
    var = ss * inv_n - mu * mu
    return (h - mu) * jax.lax.rsqrt(var + LN_EPS)


def rl_dqn_kernel(state_ref, w1_ref, w2_ref, wh_ref, vecs_ref, out_ref, *, h1, h2):
    vecs = vecs_ref[...]                              # (8, 128) f32 bias slab
    b1 = vecs[0:1, :]
    b2 = vecs[1:2, :]                                 # includes folded LN1 beta
    bh = vecs[2:3, :]                                 # includes folded LN2 beta + dueling fold

    x = state_ref[...]                                # (TB, state_dim) f32

    # ---- state encoder: Linear -> ReLU -> LayerNorm -> Dropout(identity) ----
    h = jnp.dot(x, w1_ref[...], preferred_element_type=jnp.float32) + b1
    h = jnp.maximum(h, 0.0)
    h = _ln_no_affine(h, float(h1))                   # gamma1/beta1 folded into w2/b2

    h = jnp.dot(h.astype(w2_ref.dtype), w2_ref[...],
                preferred_element_type=jnp.float32) + b2
    h = jnp.maximum(h, 0.0)
    h = _ln_no_affine(h, float(h2))                   # gamma2/beta2 folded into wh/bh
    # self.dropout(state_features) -> identity in eval mode

    # ---- fused heads: ONE MXU pass, columns already in final output layout ----
    #  cols [0,A)        : q
    #  cols [A,2A)       : dueling_q  (v + a - mean(a), fully folded into weights)
    #  col  2A           : v
    #  cols [2A+1,3A+1)  : a
    #  col  3A+1         : exploration logit (sigmoid applied in wrapper)
    #  rest              : 0
    hd = jnp.dot(h.astype(wh_ref.dtype), wh_ref[...],
                 preferred_element_type=jnp.float32) + bh

    out_ref[...] = hd.astype(out_ref.dtype)           # single lane-dense store


def make_params(key, state_dim, action_dim, hidden_dims):
    """Deterministic parameter init (shapes match the PyTorch module).

    LayerNorm gamma/beta are randomized (instead of 1/0) so the weight-folding
    paths are actually exercised by the correctness check.
    """
    params = {}

    def linear(key, fan_in, fan_out):
        kw, kb = jax.random.split(key)
        bound = 1.0 / jnp.sqrt(jnp.float32(fan_in))
        w = jax.random.uniform(kw, (fan_in, fan_out), jnp.float32, -bound, bound)
        b = jax.random.uniform(kb, (1, fan_out), jnp.float32, -bound, bound)
        return w, b

    keys = jax.random.split(key, 10)
    h1, h2 = hidden_dims

    params["w1"], params["b1"] = linear(keys[0], state_dim, h1)
    params["g1"] = 1.0 + 0.2 * jax.random.normal(keys[6], (1, h1), jnp.float32)
    params["bt1"] = 0.1 * jax.random.normal(keys[7], (1, h1), jnp.float32)

    params["w2"], params["b2"] = linear(keys[1], h1, h2)
    params["g2"] = 1.0 + 0.2 * jax.random.normal(keys[8], (1, h2), jnp.float32)
    params["bt2"] = 0.1 * jax.random.normal(keys[9], (1, h2), jnp.float32)

    params["wq"], params["bq"] = linear(keys[2], h2, action_dim)
    params["wv"], params["bv"] = linear(keys[3], h2, 1)
    params["wa"], params["ba"] = linear(keys[4], h2, action_dim)
    params["we"], params["be"] = linear(keys[5], h2, 1)
    return params


def pack_params(params, state_dim, action_dim, hidden_dims):
    """Pack the 16 logical parameter arrays into 4 lane-dense slabs.

    All folds (LayerNorm affine -> next-layer weights, dueling mean-subtraction
    -> head columns) are done here in f32; the two 128x128 slabs are then cast
    to bf16 for MXU-native operands.
    """
    h1, h2 = hidden_dims
    A = action_dim
    assert 3 * A + 2 <= H_PAD and h1 <= H_PAD and h2 <= H_PAD

    # Layer 1: f32 operands, K = state_dim left unpadded (tiny, DMA-contiguous).
    w1p = jnp.zeros((state_dim, H_PAD), jnp.float32).at[:, :h1].set(params["w1"])

    # Layer 2 with LN1 gamma/beta folded in:  y = z*g1 + bt1 ; y@w2+b2
    #   = z @ (diag(g1) @ w2) + (bt1 @ w2 + b2)
    w2_f = params["g1"].reshape(h1, 1) * params["w2"]            # [h1, h2]
    b2_f = params["bt1"] @ params["w2"] + params["b2"]           # [1, h2]
    w2p = jnp.zeros((H_PAD, H_PAD), jnp.float32).at[:h1, :h2].set(w2_f)

    # Fused head weight (logical), columns in final output order, with the
    # dueling mean-subtraction baked in:
    #   dq = v + a - mean(a)  is linear in h  =>  W_dq = wv + wa - colmean(wa)
    wa_mean = jnp.mean(params["wa"], axis=1, keepdims=True)      # [h2, 1]
    ba_mean = jnp.mean(params["ba"], axis=1, keepdims=True)      # [1, 1]
    wdq = params["wv"] + params["wa"] - wa_mean                  # [h2, A]
    bdq = params["bv"] + params["ba"] - ba_mean                  # [1, A]

    wh_l = jnp.zeros((h2, H_PAD), jnp.float32)
    wh_l = wh_l.at[:, 0:A].set(params["wq"])
    wh_l = wh_l.at[:, A:2 * A].set(wdq)
    wh_l = wh_l.at[:, 2 * A:2 * A + 1].set(params["wv"])
    wh_l = wh_l.at[:, 2 * A + 1:3 * A + 1].set(params["wa"])
    wh_l = wh_l.at[:, 3 * A + 1:3 * A + 2].set(params["we"])

    bh_l = jnp.zeros((1, H_PAD), jnp.float32)
    bh_l = bh_l.at[:, 0:A].set(params["bq"])
    bh_l = bh_l.at[:, A:2 * A].set(bdq)
    bh_l = bh_l.at[:, 2 * A:2 * A + 1].set(params["bv"])
    bh_l = bh_l.at[:, 2 * A + 1:3 * A + 1].set(params["ba"])
    bh_l = bh_l.at[:, 3 * A + 1:3 * A + 2].set(params["be"])

    # Fold LN2 gamma/beta into the head.
    wh_f = params["g2"].reshape(h2, 1) * wh_l                    # [h2, H_PAD]
    bh_f = params["bt2"] @ wh_l + bh_l                           # [1, H_PAD]
    whp = jnp.zeros((H_PAD, H_PAD), jnp.float32).at[:h2, :].set(wh_f)

    def row(v):
        n = v.shape[-1]
        return jnp.zeros((1, H_PAD), jnp.float32).at[:, :n].set(v)

    vecs = jnp.concatenate(
        [row(params["b1"]), row(b2_f), row(bh_f)]
        + [jnp.zeros((1, H_PAD), jnp.float32)] * 5, axis=0)      # (8, 128) f32

    return w1p, w2p.astype(PARAM_DTYPE), whp.astype(PARAM_DTYPE), vecs


def rl_network_forward(state, packed, action_dim, hidden_dims):
    w1p, w2p, whp, vecs = packed
    h1, h2 = hidden_dims
    B, S = state.shape
    A = action_dim

    # Batch tile: big enough to amortize the ~0.35 us fixed grid-step overhead,
    # capped at 2048 rows, and chosen so large batches get >=2 parallel grid
    # steps (keeps both v7x TensorCores busy via dimension_semantics).
    TB = min(MAX_BATCH_TILE, _round_up(max(pl.cdiv(B, 2), 1), 8))
    B_pad = _round_up(B, TB)
    state_p = state if B_pad == B else jnp.pad(state, ((0, B_pad - B), (0, 0)))

    kernel = functools.partial(rl_dqn_kernel, h1=h1, h2=h2)

    grid_spec = pltpu.PrefetchScalarGridSpec(
        num_scalar_prefetch=0,
        grid=(B_pad // TB,),
        in_specs=[
            pl.BlockSpec((TB, S), lambda i: (i, 0)),        # state: tiled over batch
            pl.BlockSpec((S, H_PAD), lambda i: (0, 0)),     # weights stay resident
            pl.BlockSpec((H_PAD, H_PAD), lambda i: (0, 0)),
            pl.BlockSpec((H_PAD, H_PAD), lambda i: (0, 0)),
            pl.BlockSpec((8, H_PAD), lambda i: (0, 0)),
        ],
        out_specs=pl.BlockSpec((TB, H_PAD), lambda i: (i, 0)),
    )

    out = pl.pallas_call(
        kernel,
        out_shape=jax.ShapeDtypeStruct((B_pad, H_PAD), OUT_DTYPE),
        grid_spec=grid_spec,
        compiler_params=pltpu.CompilerParams(
            dimension_semantics=("parallel",),
            vmem_limit_bytes=VMEM_LIMIT_BYTES),
    )(state_p, w1p, w2p, whp, vecs)

    out = out[:B].astype(jnp.float32)
    return {
        "q_values": out[:, 0:A],
        "dueling_q": out[:, A:2 * A],
        "value": out[:, 2 * A:2 * A + 1],
        "advantage": out[:, 2 * A + 1:3 * A + 1],
        # sigmoid on the tiny [B,1] slice happens here, not over 128 lanes in-kernel
        "exploration_bonus": jax.nn.sigmoid(out[:, 3 * A + 1:3 * A + 2]),
    }


def rl_network_forward_ref(state, params):
    """Pure-JAX reference of the PyTorch forward (dqn, eval mode)."""
    def ln(h, gamma, beta):
        mu = jnp.mean(h, axis=-1, keepdims=True)
        var = jnp.mean((h - mu) * (h - mu), axis=-1, keepdims=True)
        return (h - mu) * jax.lax.rsqrt(var + LN_EPS) * gamma + beta

    h = jnp.maximum(state @ params["w1"] + params["b1"], 0.0)
    h = ln(h, params["g1"], params["bt1"])
    h = jnp.maximum(h @ params["w2"] + params["b2"], 0.0)
    h = ln(h, params["g2"], params["bt2"])
    q = h @ params["wq"] + params["bq"]
    v = h @ params["wv"] + params["bv"]
    a = h @ params["wa"] + params["ba"]
    dq = v + a - jnp.mean(a, axis=-1, keepdims=True)
    e = jax.nn.sigmoid(h @ params["we"] + params["be"])
    return {"q_values": q, "dueling_q": dq, "value": v, "advantage": a,
            "exploration_bonus": e}


if __name__ == "__main__":
    state_dim = 16
    action_dim = 4
    batch = 2
    hidden_dims = DEFAULT_HIDDEN_LAYERS

    key = jax.random.PRNGKey(0)
    k_state, k_params = jax.random.split(key)

    state = jax.random.normal(k_state, (batch, state_dim), jnp.float32)
    params = make_params(k_params, state_dim, action_dim, hidden_dims)
    packed = pack_params(params, state_dim, action_dim, hidden_dims)

    outs = rl_network_forward(state, packed, action_dim, hidden_dims)
    outs = jax.block_until_ready(outs)

    ref = rl_network_forward_ref(state, params)
    # bf16 matmul operands / bf16 output slab -> looser tolerance than pure f32.
    for name in ["q_values", "dueling_q", "value", "advantage", "exploration_bonus"]:
        assert outs[name].shape == ref[name].shape, name
        assert jnp.allclose(outs[name], ref[name], atol=3e-2, rtol=3e-2), name

    print("KERNEL_OK")
</pallas_src>

<mosaic_0001>
module attributes {stable_mosaic.version = 11 : i64} {
  func.func @rl_dqn_kernel(%arg0: i32, %arg1: memref<8x16xf32, #tpu.memory_space<vmem>>, %arg2: memref<16x128xf32, #tpu.memory_space<vmem>>, %arg3: memref<128x128xbf16, #tpu.memory_space<vmem>>, %arg4: memref<128x128xbf16, #tpu.memory_space<vmem>>, %arg5: memref<8x128xf32, #tpu.memory_space<vmem>>, %arg6: memref<8x128xbf16, #tpu.memory_space<vmem>>) attributes {dimension_semantics = [#tpu.dimension_semantics<parallel>], iteration_bounds = array<i64: 1>, scalar_prefetch = 0 : i64, scratch_operands = 0 : i64, tpu.core_type = #tpu.core_type<tc>, window_params = [{transform_indices = @transform_0, window_bounds = array<i64: 8, 16>}, {pipeline_mode = #tpu.pipeline_mode<synchronous>, transform_indices = @transform_1, window_bounds = array<i64: 16, 128>}, {pipeline_mode = #tpu.pipeline_mode<synchronous>, transform_indices = @transform_2, window_bounds = array<i64: 128, 128>}, {pipeline_mode = #tpu.pipeline_mode<synchronous>, transform_indices = @transform_3, window_bounds = array<i64: 128, 128>}, {pipeline_mode = #tpu.pipeline_mode<synchronous>, transform_indices = @transform_4, window_bounds = array<i64: 8, 128>}, {transform_indices = @transform_5, window_bounds = array<i64: 8, 128>}]} {
    %c0 = arith.constant 0 : index
    %c0_0 = arith.constant 0 : index
    %0 = vector.load %arg5[%c0, %c0_0] : memref<8x128xf32, #tpu.memory_space<vmem>>, vector<8x128xf32>
    %1 = vector.extract_strided_slice %0 {offsets = [0, 0], sizes = [1, 128], strides = [1, 1]} : vector<8x128xf32> to vector<1x128xf32>
    %2 = vector.extract_strided_slice %0 {offsets = [1, 0], sizes = [1, 128], strides = [1, 1]} : vector<8x128xf32> to vector<1x128xf32>
    %3 = vector.extract_strided_slice %0 {offsets = [2, 0], sizes = [1, 128], strides = [1, 1]} : vector<8x128xf32> to vector<1x128xf32>
    %c0_1 = arith.constant 0 : index
    %c0_2 = arith.constant 0 : index
    %4 = vector.load %arg1[%c0_1, %c0_2] : memref<8x16xf32, #tpu.memory_space<vmem>>, vector<8x16xf32>
    %c0_3 = arith.constant 0 : index
    %c0_4 = arith.constant 0 : index
    %5 = vector.load %arg2[%c0_3, %c0_4] : memref<16x128xf32, #tpu.memory_space<vmem>>, vector<16x128xf32>
    %cst = arith.constant dense<0.000000e+00> : vector<8x128xf32>
    %6 = tpu.matmul %4, %5, %cst {dimension_numbers = #tpu.dot_dimension_numbers<[1], [0], [0], [1], [0, 0, 1, 1], [], []>} : vector<8x16xf32>, vector<16x128xf32>, vector<8x128xf32> -> vector<8x128xf32>
    %7 = vector.broadcast %1 : vector<1x128xf32> to vector<8x128xf32>
    %8 = arith.addf %6, %7 : vector<8x128xf32>
    %cst_5 = arith.constant 0.000000e+00 : f32
    %9 = vector.broadcast %cst_5 : f32 to vector<8x128xf32>
    %10 = arith.maximumf %8, %9 : vector<8x128xf32>
    %cst_6 = arith.constant dense<0.000000e+00> : vector<8xf32>
    %11 = vector.multi_reduction <add>, %10, %cst_6 [1] : vector<8x128xf32> to vector<8xf32>
    %12 = vector.shape_cast %11 : vector<8xf32> to vector<8x1xf32>
    %13 = arith.mulf %10, %10 : vector<8x128xf32>
    %cst_7 = arith.constant dense<0.000000e+00> : vector<8xf32>
    %14 = vector.multi_reduction <add>, %13, %cst_7 [1] : vector<8x128xf32> to vector<8xf32>
    %15 = vector.shape_cast %14 : vector<8xf32> to vector<8x1xf32>
    %cst_8 = arith.constant 1.562500e-02 : f32
    %16 = vector.broadcast %cst_8 : f32 to vector<8x1xf32>
    %17 = arith.mulf %12, %16 : vector<8x1xf32>
    %cst_9 = arith.constant 1.562500e-02 : f32
    %18 = vector.broadcast %cst_9 : f32 to vector<8x1xf32>
    %19 = arith.mulf %15, %18 : vector<8x1xf32>
    %20 = arith.mulf %17, %17 : vector<8x1xf32>
    %21 = arith.subf %19, %20 : vector<8x1xf32>
    %22 = vector.broadcast %17 : vector<8x1xf32> to vector<8x128xf32>
    %23 = arith.subf %10, %22 : vector<8x128xf32>
    %cst_10 = arith.constant 9.99999974E-6 : f32
    %24 = vector.broadcast %cst_10 : f32 to vector<8x1xf32>
    %25 = arith.addf %21, %24 : vector<8x1xf32>
    %26 = math.rsqrt %25 : vector<8x1xf32>
    %27 = vector.broadcast %26 : vector<8x1xf32> to vector<8x128xf32>
    %28 = arith.mulf %23, %27 : vector<8x128xf32>
    %29 = arith.truncf %28 : vector<8x128xf32> to vector<8x128xbf16>
    %c0_11 = arith.constant 0 : index
    %c0_12 = arith.constant 0 : index
    %30 = vector.load %arg3[%c0_11, %c0_12] : memref<128x128xbf16, #tpu.memory_space<vmem>>, vector<128x128xbf16>
    %cst_13 = arith.constant dense<0.000000e+00> : vector<8x128xf32>
    %31 = tpu.matmul %29, %30, %cst_13 {dimension_numbers = #tpu.dot_dimension_numbers<[1], [0], [0], [1], [0, 0, 1, 1], [], []>} : vector<8x128xbf16>, vector<128x128xbf16>, vector<8x128xf32> -> vector<8x128xf32>
    %32 = vector.broadcast %2 : vector<1x128xf32> to vector<8x128xf32>
    %33 = arith.addf %31, %32 : vector<8x128xf32>
    %cst_14 = arith.constant 0.000000e+00 : f32
    %34 = vector.broadcast %cst_14 : f32 to vector<8x128xf32>
    %35 = arith.maximumf %33, %34 : vector<8x128xf32>
    %cst_15 = arith.constant dense<0.000000e+00> : vector<8xf32>
    %36 = vector.multi_reduction <add>, %35, %cst_15 [1] : vector<8x128xf32> to vector<8xf32>
    %37 = vector.shape_cast %36 : vector<8xf32> to vector<8x1xf32>
    %38 = arith.mulf %35, %35 : vector<8x128xf32>
    %cst_16 = arith.constant dense<0.000000e+00> : vector<8xf32>
    %39 = vector.multi_reduction <add>, %38, %cst_16 [1] : vector<8x128xf32> to vector<8xf32>
    %40 = vector.shape_cast %39 : vector<8xf32> to vector<8x1xf32>
    %cst_17 = arith.constant 3.125000e-02 : f32
    %41 = vector.broadcast %cst_17 : f32 to vector<8x1xf32>
    %42 = arith.mulf %37, %41 : vector<8x1xf32>
    %cst_18 = arith.constant 3.125000e-02 : f32
    %43 = vector.broadcast %cst_18 : f32 to vector<8x1xf32>
    %44 = arith.mulf %40, %43 : vector<8x1xf32>
    %45 = arith.mulf %42, %42 : vector<8x1xf32>
    %46 = arith.subf %44, %45 : vector<8x1xf32>
    %47 = vector.broadcast %42 : vector<8x1xf32> to vector<8x128xf32>
    %48 = arith.subf %35, %47 : vector<8x128xf32>
    %cst_19 = arith.constant 9.99999974E-6 : f32
    %49 = vector.broadcast %cst_19 : f32 to vector<8x1xf32>
    %50 = arith.addf %46, %49 : vector<8x1xf32>
    %51 = math.rsqrt %50 : vector<8x1xf32>
    %52 = vector.broadcast %51 : vector<8x1xf32> to vector<8x128xf32>
    %53 = arith.mulf %48, %52 : vector<8x128xf32>
    %54 = arith.truncf %53 : vector<8x128xf32> to vector<8x128xbf16>
    %c0_20 = arith.constant 0 : index
    %c0_21 = arith.constant 0 : index
    %55 = vector.load %arg4[%c0_20, %c0_21] : memref<128x128xbf16, #tpu.memory_space<vmem>>, vector<128x128xbf16>
    %cst_22 = arith.constant dense<0.000000e+00> : vector<8x128xf32>
    %56 = tpu.matmul %54, %55, %cst_22 {dimension_numbers = #tpu.dot_dimension_numbers<[1], [0], [0], [1], [0, 0, 1, 1], [], []>} : vector<8x128xbf16>, vector<128x128xbf16>, vector<8x128xf32> -> vector<8x128xf32>
    %57 = vector.broadcast %3 : vector<1x128xf32> to vector<8x128xf32>
    %58 = arith.addf %56, %57 : vector<8x128xf32>
    %59 = arith.truncf %58 : vector<8x128xf32> to vector<8x128xbf16>
    %c0_23 = arith.constant 0 : index
    %c0_24 = arith.constant 0 : index
    %60 = vector.load %arg6[%c0_23, %c0_24] : memref<8x128xbf16, #tpu.memory_space<vmem>>, vector<8x128xbf16>
    tpu.vector_store %arg6[%c0_23, %c0_24], %59 {strides = array<i32>} : memref<8x128xbf16, #tpu.memory_space<vmem>>, vector<8x128xbf16>,
    return
  }
  func.func @transform_0(%arg0: i32) -> (i32, i32) {
    %c0_i32 = arith.constant 0 : i32
    %c0_i32_0 = arith.constant 0 : i32
    return %arg0, %c0_i32 : i32, i32
  }
  func.func @transform_1(%arg0: i32) -> (i32, i32) {
    %c0_i32 = arith.constant 0 : i32
    %c0_i32_0 = arith.constant 0 : i32
    %c0_i32_1 = arith.constant 0 : i32
    return %c0_i32, %c0_i32_0 : i32, i32
  }
  func.func @transform_2(%arg0: i32) -> (i32, i32) {
    %c0_i32 = arith.constant 0 : i32
    %c0_i32_0 = arith.constant 0 : i32
    %c0_i32_1 = arith.constant 0 : i32
    return %c0_i32, %c0_i32_0 : i32, i32
  }
  func.func @transform_3(%arg0: i32) -> (i32, i32) {
    %c0_i32 = arith.constant 0 : i32
    %c0_i32_0 = arith.constant 0 : i32
    %c0_i32_1 = arith.constant 0 : i32
    return %c0_i32, %c0_i32_0 : i32, i32
  }
  func.func @transform_4(%arg0: i32) -> (i32, i32) {
    %c0_i32 = arith.constant 0 : i32
    %c0_i32_0 = arith.constant 0 : i32
    %c0_i32_1 = arith.constant 0 : i32
    return %c0_i32, %c0_i32_0 : i32, i32
  }
  func.func @transform_5(%arg0: i32) -> (i32, i32) {
    %c0_i32 = arith.constant 0 : i32
    %c0_i32_0 = arith.constant 0 : i32
    return %arg0, %c0_i32 : i32, i32
  }
}

</mosaic_0001>

<llo_original>
// kernel: tpu_custom_call.1
$region0: #{tpu_custom_call.1}
  #allocation0 [shape = 'u32[]', space=smem, size = 0x4, offset = 0x4, fixed_abs, tag = 'smem constant byte address 0x4 - core index']
  #allocation1 [shape = 'u32[144,128]{1,0:T(1,128)}', space=vmem, size = 0x12000, scoped, tag = 'internal scratch']
  %s0 = inlined_call_operand.hbm [shape: f32[8,16], index: 0, kind: input, shape index: {}]
  %s1 = inlined_call_operand.hbm [shape: f32[16,128], index: 1, kind: input, shape index: {}]
  %s2 = inlined_call_operand.hbm [shape: bf16[128,128], index: 2, kind: input, shape index: {}]
  %s3 = inlined_call_operand.hbm [shape: bf16[128,128], index: 3, kind: input, shape index: {}]
  %s4 = inlined_call_operand.vmem [shape: f32[8,128], index: 4, kind: input, shape index: {}]
  %s5 = inlined_call_operand.hbm [shape: bf16[8,128], index: 5, kind: output, shape index: {}]
  %s6 = sld [smem:[#allocation0]]
  $region46: #{tpu_custom_call.1} parent=0
    _
  %s8 = ssub.s32 1, %s6
  %s9 = scalar_select 0, %s8, %s6
  $region1: #{tpu_custom_call.1} parent=0
    #allocation2 [shape = 'u8[4096]{0}', space=vmem, size = 0x1000, scoped, tag = 'input window, operand 0, single buffered']
    #allocation3 [shape = 's32[1]{0}', space=sflag, size = 0x4, scoped, tag = 'scoped memory for tpu_custom_call.1']
    #allocation4 [shape = 's32[1]{0}', space=sflag, size = 0x4, scoped, tag = 'scoped memory for tpu_custom_call.1']
    #allocation5 [shape = 'u8[8192]{0}', space=vmem, size = 0x2000, scoped, tag = 'input window, operand 1, single buffered']
    #allocation6 [shape = 's32[1]{0}', space=sflag, size = 0x4, scoped, tag = 'scoped memory for tpu_custom_call.1']
    #allocation7 [shape = 'u8[32768]{0}', space=vmem, size = 0x8000, scoped, tag = 'input window, operand 2, single buffered']
    #allocation8 [shape = 'u8[32768]{0}', space=vmem, size = 0x8000, scoped, tag = 'input window, operand 3, single buffered']
    #allocation9 [shape = 's32[1]{0}', space=sflag, size = 0x4, scoped, tag = 'scoped memory for tpu_custom_call.1']
    #allocation10 [shape = 'u8[2048]{0}', space=vmem, size = 0x800, scoped, tag = 'output window, operand 0, single buffered']
    %10 = vsyncpa [#allocation3], 0
    %11 = vsyncpa [#allocation6], 0
    %12 = vsyncpa [#allocation9], 0
    %13 = vsyncpa [#allocation4], 0
    // Predicated region
    $region2: #{tpu_custom_call.1} parent=1 // pred_check
      _
    $region3: #{tpu_custom_call.1} parent=1 // pred_check_branch
      %15 = sbr.rel (0) target = $region5
    $region4: #{tpu_custom_call.1} parent=1 // pred_region
      %s17 = ssub.s32 128, 128
      %18 = vsyncadd [#allocation3], %s17
      %s20 = sshll.u32 [#allocation2], 4
      %s21 = int_to_ptr.vmem [resolvable:$true] %s20
      %23 = dma.hbm_to_vmem [thread:$0]  %s0, 128, %s21, [#allocation3]
    $region5: #{tpu_custom_call.1} parent=1 // pred_fallthru
      _
    // Predicated region
    $region6: #{tpu_custom_call.1} parent=1 // pred_check
      _
    $region7: #{tpu_custom_call.1} parent=1 // pred_check_branch
      %25 = sbr.rel (0) target = $region9
    $region8: #{tpu_custom_call.1} parent=1 // pred_region
      %s27 = ssub.s32 256, 256
      %28 = vsyncadd [#allocation6], %s27
      %s29 = sshll.u32 [#allocation5], 4
      %s30 = int_to_ptr.vmem [resolvable:$true] %s29
      %35 = dma.hbm_to_vmem [thread:$0]  %s1, 256, %s30, [#allocation6], 128, 128, 8
    $region9: #{tpu_custom_call.1} parent=1 // pred_fallthru
      _
    // Predicated region
    $region10: #{tpu_custom_call.1} parent=1 // pred_check
      _
    $region11: #{tpu_custom_call.1} parent=1 // pred_check_branch
      %37 = sbr.rel (0) target = $region13
    $region12: #{tpu_custom_call.1} parent=1 // pred_region
      %s39 = ssub.s32 1024, 1024
      %40 = vsyncadd [#allocation6], %s39
      %s41 = sshll.u32 [#allocation7], 4
      %s42 = int_to_ptr.vmem [resolvable:$true] %s41
      %47 = dma.hbm_to_vmem [thread:$0]  %s2, 1024, %s42, [#allocation6], 64, 64, 4
    $region13: #{tpu_custom_call.1} parent=1 // pred_fallthru
      _
    // Predicated region
    $region14: #{tpu_custom_call.1} parent=1 // pred_check
      _
    $region15: #{tpu_custom_call.1} parent=1 // pred_check_branch
      %49 = sbr.rel (0) target = $region17
    $region16: #{tpu_custom_call.1} parent=1 // pred_region
      %s51 = ssub.s32 1024, 1024
      %52 = vsyncadd [#allocation9], %s51
      %s53 = sshll.u32 [#allocation8], 4
      %s54 = int_to_ptr.vmem [resolvable:$true] %s53
      %59 = dma.hbm_to_vmem [thread:$0]  %s3, 1024, %s54, [#allocation9], 64, 64, 4
    $region17: #{tpu_custom_call.1} parent=1 // pred_fallthru
      _
    // Predicated region
    $region18: #{tpu_custom_call.1} parent=1 // pred_check
      _
    $region19: #{tpu_custom_call.1} parent=1 // pred_check_branch
      %61 = sbr.rel (0) target = $region21
    $region20: #{tpu_custom_call.1} parent=1 // pred_region
      _
    $region21: #{tpu_custom_call.1} parent=1 // pred_fallthru
      _
    // Predicated region
    $region22: #{tpu_custom_call.1} parent=1 // pred_check
      _
    $region23: #{tpu_custom_call.1} parent=1 // pred_check_branch
      %63 = sbr.rel (0) target = $region25
    $region24: #{tpu_custom_call.1} parent=1 // pred_region
      %64 = dma.done [#allocation3], 128
    $region25: #{tpu_custom_call.1} parent=1 // pred_fallthru
      _
    // Predicated region
    $region26: #{tpu_custom_call.1} parent=1 // pred_check
      _
    $region27: #{tpu_custom_call.1} parent=1 // pred_check_branch
      %66 = sbr.rel (0) target = $region29
    $region28: #{tpu_custom_call.1} parent=1 // pred_region
      %67 = dma.done [#allocation6], 256
    $region29: #{tpu_custom_call.1} parent=1 // pred_fallthru
      _
    // Predicated region
    $region30: #{tpu_custom_call.1} parent=1 // pred_check
      _
    $region31: #{tpu_custom_call.1} parent=1 // pred_check_branch
      %69 = sbr.rel (0) target = $region33
    $region32: #{tpu_custom_call.1} parent=1 // pred_region
      %70 = dma.done [#allocation6], 1024
    $region33: #{tpu_custom_call.1} parent=1 // pred_fallthru
      _
    // Predicated region
    $region34: #{tpu_custom_call.1} parent=1 // pred_check
      _
    $region35: #{tpu_custom_call.1} parent=1 // pred_check_branch
      %72 = sbr.rel (0) target = $region37
    $region36: #{tpu_custom_call.1} parent=1 // pred_region
      %73 = dma.done [#allocation9], 1024
    $region37: #{tpu_custom_call.1} parent=1 // pred_fallthru
      _
    %v75 = vld [vmem:[%s4] sm:$0xff]
    %v76 = vld [vmem:[#allocation2] sm:$0xff]
    %v77 = vld [vmem:[#allocation5] sm:$0xff]
    %v78 = vld [vmem:[#allocation5 + $0x8] sm:$0xff]
    %v79 = vlaneseq
    %v80 = vshrl.u32 %v79, 7
    %v81 = vsub.s32 0, %v80
    %v82 = vrot.slane %v75, %v81
    %vm83 = vcmask 130048
    %v85 = vsel %vm83, %v76, 0
    %87 = vmatprep.subr.mxu0 0.0
    %88 = vmatpush1.msra.mxu0 %v77
    %89 = vmatprep.subr.mxu0 0.0
    %90 = vmatpush1.msra.mxu0 %v78
    %91 = vmatprep.subr.mxu0 0.0
    %92 = vmatpush1.msra.mxu0 0.0
    %93 = vmatprep.subr.mxu0 0.0
    %94 = vmatpush1.msra.mxu0 0.0
    %95 = vmatprep.subr.mxu0 0.0
    %96 = vmatpush1.msra.mxu0 0.0
    %97 = vmatprep.subr.mxu0 0.0
    %98 = vmatpush1.msra.mxu0 0.0
    %99 = vmatprep.subr.mxu0 0.0
    %100 = vmatpush1.msra.mxu0 0.0
    %101 = vmatprep.subr.mxu0 0.0
    %102 = vmatpush1.msra.mxu0 0.0
    %103 = vmatprep.subr.mxu0 0.0
    %104 = vmatpush1.msra.mxu0 0.0
    %105 = vmatprep.subr.mxu0 0.0
    %106 = vmatpush1.msra.mxu0 0.0
    %107 = vmatprep.subr.mxu0 0.0
    %108 = vmatpush1.msra.mxu0 0.0
    %109 = vmatprep.subr.mxu0 0.0
    %110 = vmatpush1.msra.mxu0 0.0
    %111 = vmatprep.subr.mxu0 0.0
    %112 = vmatpush1.msra.mxu0 0.0
    %113 = vmatprep.subr.mxu0 0.0
    %114 = vmatpush1.msra.mxu0 0.0
    %115 = vmatprep.subr.mxu0 0.0
    %116 = vmatpush1.msra.mxu0 0.0
    %117 = vmatprep.subr.mxu0 0.0
    %118 = vmatpush1.msra.mxu0 0.0
    %119 = vmatprep.subr.mxu0 0.0
    %120 = vmatpush1.msra.mxu0 0.0
    %121 = vmatprep.subr.mxu0 0.0
    %122 = vmatpush1.msra.mxu0 0.0
    %123 = vmatprep.subr.mxu0 0.0
    %124 = vmatpush1.msra.mxu0 0.0
    %125 = vmatprep.subr.mxu0 0.0
    %126 = vmatpush1.msra.mxu0 0.0
    %127 = vmatprep.subr.mxu0 0.0
    %128 = vmatpush1.msra.mxu0 0.0
    %129 = vmatprep.subr.mxu0 0.0
    %130 = vmatpush1.msra.mxu0 0.0
    %131 = vmatprep.subr.mxu0 0.0
    %132 = vmatpush1.msra.mxu0 0.0
    %133 = vmatprep.subr.mxu0 0.0
    %134 = vmatpush1.msra.mxu0 0.0
    %135 = vmatprep.subr.mxu0 0.0
    %136 = vmatpush1.msra.mxu0 0.0
    %137 = vmatprep.subr.mxu0 0.0
    %138 = vmatpush1.msra.mxu0 0.0
    %139 = vmatprep.subr.mxu0 0.0
    %140 = vmatpush1.msra.mxu0 0.0
    %141 = vmatprep.subr.mxu0 0.0
    %142 = vmatpush1.msra.mxu0 0.0
    %143 = vmatprep.subr.mxu0 0.0
    %144 = vmatpush1.msra.mxu0 0.0
    %145 = vmatprep.subr.mxu0 0.0
    %146 = vmatpush1.msra.mxu0 0.0
    %147 = vmatprep.subr.mxu0 0.0
    %148 = vmatpush1.msra.mxu0 0.0
    %149 = vmatprep.subr.mxu0 0.0
    %150 = vmatpush1.msra.mxu0 0.0
    %151 = vmatprep.mubr.f32.mxu0 0.0
    %152 = vmatmul.mubr.f32.gmra.mrb[0].mxu0 %v85
    %v153 = vpop.f32.mrb[0].mxu0
    %v154 = vadd.f32 %v82, %v153
    %v155 = vpop.f32.mrb[0].mxu0
    %156 = vdwg.mxu0
    %v157 = vmax.f32 %v154, 0.0
    %158 = vadd.xlane.f32.xlu0 %v157
    %v159 = vpop.xlane.xlu0 %158
    %v160 = vmul.f32 %v157, %v157
    %161 = vadd.xlane.f32.xlu0 %v160
    %v162 = vpop.xlane.xlu0 %161
    %v163 = vmul.f32 %v159, 0.015625
    %v164 = vmul.f32 %v162, 0.015625
    %v165 = vmul.f32 %v163, %v163
    %v166 = vsub.f32 %v164, %v165
    %v167 = vsub.f32 %v157, %v163
    %v168 = vadd.f32 %v166, 1e-05
    %v169 = vrsqrt.pop %v168
    %v170 = vmul.f32 %v167, %v169
    %v171 = vpack.c.bf16 %v170, %v170
    %v172 = vld [vmem:[#allocation7] sm:$0xf]
    %v173 = vld [vmem:[#allocation7 + $0x4] sm:$0xf]
    %v174 = vld [vmem:[#allocation7 + $0x8] sm:$0xf]
    %v175 = vld [vmem:[#allocation7 + $0xc] sm:$0xf]
    %v176 = vld [vmem:[#allocation7 + $0x10] sm:$0xf]
    %v177 = vld [vmem:[#allocation7 + $0x14] sm:$0xf]
    %v178 = vld [vmem:[#allocation7 + $0x18] sm:$0xf]
    %v179 = vld [vmem:[#allocation7 + $0x1c] sm:$0xf]
    %v180 = vld [vmem:[#allocation7 + $0x20] sm:$0xf]
    %v181 = vld [vmem:[#allocation7 + $0x24] sm:$0xf]
    %v182 = vld [vmem:[#allocation7 + $0x28] sm:$0xf]
    %v183 = vld [vmem:[#allocation7 + $0x2c] sm:$0xf]
    %v184 = vld [vmem:[#allocation7 + $0x30] sm:$0xf]
    %v185 = vld [vmem:[#allocation7 + $0x34] sm:$0xf]
    %v186 = vld [vmem:[#allocation7 + $0x38] sm:$0xf]
    %v187 = vld [vmem:[#allocation7 + $0x3c] sm:$0xf]
    %v188 = vlaneseq
    %v189 = vshrl.u32 %v188, 7
    %v190 = vsub.s32 1, %v189
    %v191 = vrot.slane %v75, %v190
    %v208 = vunpack.c.l.b16 %v172
    %v209 = vunpack.c.l.b16 %v173
    %v210 = vunpack.c.l.b16 %v174
    %v211 = vunpack.c.l.b16 %v175
    %v212 = vunpack.c.l.b16 %v176
    %v213 = vunpack.c.l.b16 %v177
    %v214 = vunpack.c.l.b16 %v178
    %v215 = vunpack.c.l.b16 %v179
    %v216 = vunpack.c.l.b16 %v180
    %v217 = vunpack.c.l.b16 %v181
    %v218 = vunpack.c.l.b16 %v182
    %v219 = vunpack.c.l.b16 %v183
    %v220 = vunpack.c.l.b16 %v184
    %v221 = vunpack.c.l.b16 %v185
    %v222 = vunpack.c.l.b16 %v186
    %v223 = vunpack.c.l.b16 %v187
    %v224 = vpack.c.b16 %v209, %v208
    %v225 = vpack.c.b16 %v211, %v210
    %v226 = vpack.c.b16 %v213, %v212
    %v227 = vpack.c.b16 %v215, %v214
    %v228 = vpack.c.b16 %v217, %v216
    %v229 = vpack.c.b16 %v219, %v218
    %v230 = vpack.c.b16 %v221, %v220
    %v231 = vpack.c.b16 %v223, %v222
    %240 = vmatprep.subr.bf16.mxu0 0
    %241 = vmatpush1.bf16.msra.mxu0 %v224
    %242 = vmatprep.subr.bf16.mxu0 0
    %243 = vmatpush1.bf16.msra.mxu0 %v225
    %244 = vmatprep.subr.bf16.mxu0 0
    %245 = vmatpush1.bf16.msra.mxu0 %v226
    %246 = vmatprep.subr.bf16.mxu0 0
    %247 = vmatpush1.bf16.msra.mxu0 %v227
    %248 = vmatprep.subr.bf16.mxu0 0
    %249 = vmatpush1.bf16.msra.mxu0 %v228
    %250 = vmatprep.subr.bf16.mxu0 0
    %251 = vmatpush1.bf16.msra.mxu0 %v229
    %252 = vmatprep.subr.bf16.mxu0 0
    %253 = vmatpush1.bf16.msra.mxu0 %v230
    %254 = vmatprep.subr.bf16.mxu0 0
    %255 = vmatpush1.bf16.msra.mxu0 %v231
    %256 = vmatprep.subr.bf16.mxu0 0
    %257 = vmatpush1.bf16.msra.mxu0 0
    %258 = vmatprep.subr.bf16.mxu0 0
    %259 = vmatpush1.bf16.msra.mxu0 0
    %260 = vmatprep.subr.bf16.mxu0 0
    %261 = vmatpush1.bf16.msra.mxu0 0
    %262 = vmatprep.subr.bf16.mxu0 0
    %263 = vmatpush1.bf16.msra.mxu0 0
    %264 = vmatprep.subr.bf16.mxu0 0
    %265 = vmatpush1.bf16.msra.mxu0 0
    %266 = vmatprep.subr.bf16.mxu0 0
    %267 = vmatpush1.bf16.msra.mxu0 0
    %268 = vmatprep.subr.bf16.mxu0 0
    %269 = vmatpush1.bf16.msra.mxu0 0
    %270 = vmatprep.subr.bf16.mxu0 0
    %271 = vmatpush1.bf16.msra.mxu0 0
    %272 = vmatprep.mubr.bf16.mxu0 0
    %273 = vmatmul.mubr.bf16.gmra.mrb[0].mxu0 %v171
    %v274 = vpop.f32.mrb[0].mxu0
    %v275 = vadd.f32 %v191, %v274
    %v276 = vpop.f32.mrb[0].mxu0
    %v277 = vpop.f32.mrb[0].mxu0
    %v278 = vpop.f32.mrb[0].mxu0
    %279 = vdwg.mxu0
    %v280 = vmax.f32 %v275, 0.0
    %281 = vadd.xlane.f32.xlu0 %v280
    %v282 = vpop.xlane.xlu0 %281
    %v283 = vmul.f32 %v280, %v280
    %284 = vadd.xlane.f32.xlu0 %v283
    %v285 = vpop.xlane.xlu0 %284
    %v286 = vmul.f32 %v282, 0.03125
    %v287 = vmul.f32 %v285, 0.03125
    %v288 = vmul.f32 %v286, %v286
    %v289 = vsub.f32 %v287, %v288
    %v290 = vsub.f32 %v280, %v286
    %v291 = vadd.f32 %v289, 1e-05
    %v292 = vrsqrt.pop %v291
    %v293 = vmul.f32 %v290, %v292
    %v294 = vpack.c.bf16 %v293, %v293
    %v295 = vld [vmem:[#allocation8] sm:$0xf]
    %v296 = vld [vmem:[#allocation8 + $0x4] sm:$0xf]
    %v297 = vld [vmem:[#allocation8 + $0x8] sm:$0xf]
    %v298 = vld [vmem:[#allocation8 + $0xc] sm:$0xf]
    %v299 = vld [vmem:[#allocation8 + $0x10] sm:$0xf]
    %v300 = vld [vmem:[#allocation8 + $0x14] sm:$0xf]
    %v301 = vld [vmem:[#allocation8 + $0x18] sm:$0xf]
    %v302 = vld [vmem:[#allocation8 + $0x1c] sm:$0xf]
    %v303 = vld [vmem:[#allocation8 + $0x20] sm:$0xf]
    %v304 = vld [vmem:[#allocation8 + $0x24] sm:$0xf]
    %v305 = vld [vmem:[#allocation8 + $0x28] sm:$0xf]
    %v306 = vld [vmem:[#allocation8 + $0x2c] sm:$0xf]
    %v307 = vld [vmem:[#allocation8 + $0x30] sm:$0xf]
    %v308 = vld [vmem:[#allocation8 + $0x34] sm:$0xf]
    %v309 = vld [vmem:[#allocation8 + $0x38] sm:$0xf]
    %v310 = vld [vmem:[#allocation8 + $0x3c] sm:$0xf]
    %v311 = vlaneseq
    %v312 = vshrl.u32 %v311, 7
    %v313 = vsub.s32 2, %v312
    %v314 = vrot.slane %v75, %v313
    %v331 = vunpack.c.l.b16 %v295
    %v332 = vunpack.c.l.b16 %v296
    %v333 = vunpack.c.l.b16 %v297
    %v334 = vunpack.c.l.b16 %v298
    %v335 = vunpack.c.l.b16 %v299
    %v336 = vunpack.c.l.b16 %v300
    %v337 = vunpack.c.l.b16 %v301
    %v338 = vunpack.c.l.b16 %v302
    %v339 = vunpack.c.l.b16 %v303
    %v340 = vunpack.c.l.b16 %v304
    %v341 = vunpack.c.l.b16 %v305
    %v342 = vunpack.c.l.b16 %v306
    %v343 = vunpack.c.l.b16 %v307
    %v344 = vunpack.c.l.b16 %v308
    %v345 = vunpack.c.l.b16 %v309
    %v346 = vunpack.c.l.b16 %v310
    %v347 = vpack.c.b16 %v332, %v331
    %v348 = vpack.c.b16 %v334, %v333
    %v349 = vpack.c.b16 %v336, %v335
    %v350 = vpack.c.b16 %v338, %v337
    %v351 = vpack.c.b16 %v340, %v339
    %v352 = vpack.c.b16 %v342, %v341
    %v353 = vpack.c.b16 %v344, %v343
    %v354 = vpack.c.b16 %v346, %v345
    %363 = vmatprep.subr.bf16.mxu0 0
    %364 = vmatpush1.bf16.msra.mxu0 %v347
    %365 = vmatprep.subr.bf16.mxu0 0
    %366 = vmatpush1.bf16.msra.mxu0 %v348
    %367 = vmatprep.subr.bf16.mxu0 0
    %368 = vmatpush1.bf16.msra.mxu0 %v349
    %369 = vmatprep.subr.bf16.mxu0 0
    %370 = vmatpush1.bf16.msra.mxu0 %v350
    %371 = vmatprep.subr.bf16.mxu0 0
    %372 = vmatpush1.bf16.msra.mxu0 %v351
    %373 = vmatprep.subr.bf16.mxu0 0
    %374 = vmatpush1.bf16.msra.mxu0 %v352
    %375 = vmatprep.subr.bf16.mxu0 0
    %376 = vmatpush1.bf16.msra.mxu0 %v353
    %377 = vmatprep.subr.bf16.mxu0 0
    %378 = vmatpush1.bf16.msra.mxu0 %v354
    %379 = vmatprep.subr.bf16.mxu0 0
    %380 = vmatpush1.bf16.msra.mxu0 0
    %381 = vmatprep.subr.bf16.mxu0 0
    %382 = vmatpush1.bf16.msra.mxu0 0
    %383 = vmatprep.subr.bf16.mxu0 0
    %384 = vmatpush1.bf16.msra.mxu0 0
    %385 = vmatprep.subr.bf16.mxu0 0
    %386 = vmatpush1.bf16.msra.mxu0 0
    %387 = vmatprep.subr.bf16.mxu0 0
    %388 = vmatpush1.bf16.msra.mxu0 0
    %389 = vmatprep.subr.bf16.mxu0 0
    %390 = vmatpush1.bf16.msra.mxu0 0
    %391 = vmatprep.subr.bf16.mxu0 0
    %392 = vmatpush1.bf16.msra.mxu0 0
    %393 = vmatprep.subr.bf16.mxu0 0
    %394 = vmatpush1.bf16.msra.mxu0 0
    %395 = vmatprep.mubr.bf16.mxu0 0
    %396 = vmatmul.mubr.bf16.gmra.mrb[0].mxu0 %v294
    %v397 = vpop.f32.mrb[0].mxu0
    %v398 = vadd.f32 %v314, %v397
    %v399 = vpop.f32.mrb[0].mxu0
    %v400 = vpop.f32.mrb[0].mxu0
    %v401 = vpop.f32.mrb[0].mxu0
    %402 = vdwg.mxu0
    %v403 = vpack.c.bf16 %v398, %v398
    %404 = vst [vmem:[#allocation10] sm:$0xf] %v403
    // Predicated region
    $region38: #{tpu_custom_call.1} parent=1 // pred_check
      _
    $region39: #{tpu_custom_call.1} parent=1 // pred_check_branch
      %406 = sbr.rel (0) target = $region41
    $region40: #{tpu_custom_call.1} parent=1 // pred_region
      %s408 = ssub.s32 64, 64
      %409 = vsyncadd [#allocation4], %s408
      %s411 = sshll.u32 [#allocation10], 4
      %s412 = int_to_ptr.vmem [resolvable:$true] %s411
      %414 = dma.vmem_to_hbm [thread:$0]  %s412, 64, %s5, [#allocation4]
    $region41: #{tpu_custom_call.1} parent=1 // pred_fallthru
      _
    // Predicated region
    $region42: #{tpu_custom_call.1} parent=1 // pred_check
      _
    $region43: #{tpu_custom_call.1} parent=1 // pred_check_branch
      %416 = sbr.rel (0) target = $region45
    $region44: #{tpu_custom_call.1} parent=1 // pred_region
      %417 = dma.done [#allocation4], 64
    $region45: #{tpu_custom_call.1} parent=1 // pred_fallthru
      _
    %418 = vsyncpa [#allocation3], 1
    %419 = vsyncpa [#allocation6], 1
    %420 = vsyncpa [#allocation9], 1
    %421 = vsyncpa [#allocation4], 1

</llo_original>
